<compile_context>
chip_gen: v5e
topology: v5e:2x2
jax: 0.10.0
libtpu: 0.0.40
codegen_flags: <defaults>
</compile_context>

<pallas_src>
import functools

import jax
import jax.numpy as jnp
from jax.experimental import pallas as pl
from jax.experimental.pallas import tpu as pltpu

LANE = 128  # lane-dense padded width for the class-logits output slab


# --------------------------------------------------------------------------- #
# Kernel
# --------------------------------------------------------------------------- #
def egnn_kernel(a_ref, p_ref, x_ref,
                w1r_ref, w1s_ref, b1_ref,
                w2r_ref, w2s_ref, b2_ref,
                w3r_ref, w3s_ref, b3_ref,
                wl_ref, bl_ref, out_ref):
    """One grid step = TB packed PyG batches (block-diagonal adjacency/pool)."""
    dt = wl_ref.dtype                       # compute dtype (f32 or bf16)
    a = a_ref[0].astype(dt)                 # (M, M)  block-diagonal adjacency
    p = p_ref[0].astype(dt)                 # (TG, M) block-diagonal mean-pool
    h = x_ref[0].astype(dt)                 # (M, F)  flattened node features

    def conv(h, wr_ref, ws_ref, b_ref):
        # GraphConv: (A@h)@W_rel + h@W_root + b, f32 accumulation on the MXU.
        agg = jnp.dot(a, h, preferred_element_type=jnp.float32).astype(dt)
        return (jnp.dot(agg, wr_ref[...], preferred_element_type=jnp.float32)
                + jnp.dot(h, ws_ref[...], preferred_element_type=jnp.float32)
                + b_ref[...])

    h = jnp.maximum(conv(h, w1r_ref, w1s_ref, b1_ref), 0.0).astype(dt)  # conv1+relu
    h = jnp.maximum(conv(h, w2r_ref, w2s_ref, b2_ref), 0.0).astype(dt)  # conv2+relu
    h = conv(h, w3r_ref, w3s_ref, b3_ref).astype(dt)                    # conv3

    pooled = jnp.dot(p, h, preferred_element_type=jnp.float32).astype(dt)  # (TG, H)
    # TODO(synk): F.dropout(p=0.5) is identity in eval mode; training-mode
    # stochastic masking would use pltpu.prng_seed / pltpu.prng_random_bits.
    logits = (jnp.dot(pooled, wl_ref[...], preferred_element_type=jnp.float32)
              + bl_ref[...])
    out_ref[0] = logits.astype(out_ref.dtype)                           # (TG, LANE)


# --------------------------------------------------------------------------- #
# Wrappers
# --------------------------------------------------------------------------- #
def pack_block_diag(mats, tb):
    """(B, R, C) per-batch matrices -> (B//tb, tb*R, tb*C) block-diagonal."""
    B, R, C = mats.shape
    s = B // tb
    m = mats.reshape(s, tb, R, C)
    eye = jnp.eye(tb, dtype=mats.dtype)
    return jnp.einsum("sirc,ij->sirjc", m, eye).reshape(s, tb * R, tb * C)


@functools.partial(jax.jit, static_argnames=("grid_steps",))
def egnn_forward_batched(adj_b, pool_b, x_b, packed_params, grid_steps=1):
    """adj_b (B,N,N), pool_b (B,G,N), x_b (B,N,F) -> padded logits (B,G,LANE)."""
    B, N, _ = adj_b.shape
    G = pool_b.shape[1]
    F = x_b.shape[-1]
    assert B % grid_steps == 0, "grid_steps must divide the number of batches"
    tb = B // grid_steps
    cd = packed_params[-2].dtype            # compute dtype from wl_pad

    # Pack TB batches per grid step: block-diagonal A/P, flattened node rows.
    adj_s = pack_block_diag(adj_b.astype(cd), tb)        # (S, tb*N, tb*N)
    pool_s = pack_block_diag(pool_b.astype(cd), tb)      # (S, tb*G, tb*N)
    x_s = x_b.astype(cd).reshape(grid_steps, tb * N, F)  # (S, tb*N, F)

    S, TG = grid_steps, tb * G

    def step_spec(shape):
        nd = len(shape)
        return pl.BlockSpec((1,) + tuple(shape[1:]),
                            lambda s, _nd=nd: (s,) + (0,) * (_nd - 1))

    def resident_spec(shape):
        nd = len(shape)
        # Grid-invariant block index -> stays VMEM-resident (no re-DMA).
        return pl.BlockSpec(tuple(shape), lambda s, _nd=nd: (0,) * _nd)

    out = pl.pallas_call(
        egnn_kernel,
        out_shape=jax.ShapeDtypeStruct((S, TG, LANE), jnp.float32),
        grid=(S,),
        in_specs=[step_spec(adj_s.shape),
                  step_spec(pool_s.shape),
                  step_spec(x_s.shape)]
                 + [resident_spec(w.shape) for w in packed_params],
        out_specs=step_spec((S, TG, LANE)),
        compiler_params=pltpu.CompilerParams(
            dimension_semantics=("parallel",)),   # 1 big step per TC on v7x
    )(adj_s, pool_s, x_s, *packed_params)

    return out.reshape(B, G, LANE)


def build_dense_graph(edge_index, batch, n_nodes, num_graphs):
    """Dense adjacency A[dst,src] and mean-pool matrix P — plain-JAX glue."""
    src, dst = edge_index[0], edge_index[1]
    adj = jnp.zeros((n_nodes, n_nodes), jnp.float32).at[dst, src].add(1.0)
    one_hot = (batch[None, :] == jnp.arange(num_graphs)[:, None]).astype(jnp.float32)
    counts = jnp.maximum(one_hot.sum(axis=1, keepdims=True), 1.0)
    return adj, one_hot / counts


def pack_params(raw_params, num_classes, compute_dtype=jnp.float32):
    """Lane-pad the classifier and cast weights to the MXU compute dtype."""
    (w1r, w1s, b1, w2r, w2s, b2, w3r, w3s, b3, wl, bl) = raw_params
    hidden = wl.shape[0]
    wl_pad = jnp.zeros((hidden, LANE), jnp.float32).at[:, :num_classes].set(wl)
    bl_pad = jnp.zeros((1, LANE), jnp.float32).at[:, :num_classes].set(bl)
    cd = compute_dtype
    # Biases stay f32 (added after f32 accumulation).
    return (w1r.astype(cd), w1s.astype(cd), b1,
            w2r.astype(cd), w2s.astype(cd), b2,
            w3r.astype(cd), w3s.astype(cd), b3,
            wl_pad.astype(cd), bl_pad)


@functools.partial(jax.jit, static_argnames=("num_graphs", "num_classes"))
def egnn_forward(x, edge_index, batch, raw_params, *, num_graphs, num_classes):
    """Module-equivalent single-call forward (one PyG batch)."""
    adj, pool = build_dense_graph(edge_index, batch, x.shape[0], num_graphs)
    packed = pack_params(raw_params, num_classes)
    out = egnn_forward_batched(adj[None], pool[None],
                               x.astype(jnp.float32)[None], packed, grid_steps=1)
    return out[0, :, :num_classes]


# --------------------------------------------------------------------------- #
# Parameters & pure-JAX reference
# --------------------------------------------------------------------------- #
def init_params(key, num_node_features, hidden_channels, num_classes):
    """Deterministic synthetic parameters (shapes match the PyTorch module)."""
    def linear(key, fan_in, fan_out, bias):
        kw, kb = jax.random.split(key)
        bound = 1.0 / jnp.sqrt(fan_in)
        # stored as (in, out) == W^T so the kernel computes x @ W^T directly
        w = jax.random.uniform(kw, (fan_in, fan_out), jnp.float32, -bound, bound)
        if bias:
            b = jax.random.uniform(kb, (1, fan_out), jnp.float32, -bound, bound)
            return w, b
        return w

    keys = jax.random.split(key, 7)
    w1r, b1 = linear(keys[0], num_node_features, hidden_channels, True)   # conv1.lin_rel
    w1s = linear(keys[1], num_node_features, hidden_channels, False)      # conv1.lin_root
    w2r, b2 = linear(keys[2], hidden_channels, hidden_channels, True)     # conv2.lin_rel
    w2s = linear(keys[3], hidden_channels, hidden_channels, False)        # conv2.lin_root
    w3r, b3 = linear(keys[4], hidden_channels, hidden_channels, True)     # conv3.lin_rel
    w3s = linear(keys[5], hidden_channels, hidden_channels, False)        # conv3.lin_root
    wl, bl = linear(keys[6], hidden_channels, num_classes, True)          # lin
    return (w1r, w1s, b1, w2r, w2s, b2, w3r, w3s, b3, wl, bl)


def reference_forward(x, edge_index, batch, raw_params, num_graphs):
    """Pure-JAX reference of the same math for a sanity check."""
    (w1r, w1s, b1, w2r, w2s, b2, w3r, w3s, b3, wl, bl) = raw_params
    n = x.shape[0]
    adj = jnp.zeros((n, n), jnp.float32).at[edge_index[1], edge_index[0]].add(1.0)

    def gc(h, wr, ws, b):
        return (adj @ h) @ wr + b + h @ ws

    h = jax.nn.relu(gc(x, w1r, w1s, b1))
    h = jax.nn.relu(gc(h, w2r, w2s, b2))
    h = gc(h, w3r, w3s, b3)
    one_hot = (batch[None, :] == jnp.arange(num_graphs)[:, None]).astype(jnp.float32)
    pooled = (one_hot @ h) / jnp.maximum(one_hot.sum(1, keepdims=True), 1.0)
    return pooled @ wl + bl


# --------------------------------------------------------------------------- #
# Demo / correctness check
# --------------------------------------------------------------------------- #
if __name__ == "__main__":
    num_node_features = 4
    hidden_channels = 32
    num_classes = 3
    n_nodes = 16
    n_edges = 40
    num_graphs = 2
    n_batches = 8     # independent PyG-style batches fused into one pallas_call
    grid_steps = 2    # 2 big steps (TB=4 each): one per TensorCore on v7x

    key = jax.random.PRNGKey(0)
    k_param, k_data = jax.random.split(key)
    raw_params = init_params(k_param, num_node_features, hidden_channels, num_classes)

    xs, edges, batches, adjs, pools, refs = [], [], [], [], [], []
    for _ in range(n_batches):
        kx, ks, kd, k_data = jax.random.split(k_data, 4)
        x = jax.random.normal(kx, (n_nodes, num_node_features), jnp.float32)
        src = jax.random.randint(ks, (n_edges,), 0, n_nodes, jnp.int32)
        dst = jax.random.randint(kd, (n_edges,), 0, n_nodes, jnp.int32)
        edge_index = jnp.stack([src, dst], axis=0)
        batch = jnp.concatenate([jnp.zeros(n_nodes // 2, jnp.int32),
                                 jnp.ones(n_nodes - n_nodes // 2, jnp.int32)])
        adj, pool = build_dense_graph(edge_index, batch, n_nodes, num_graphs)
        xs.append(x); edges.append(edge_index); batches.append(batch)
        adjs.append(adj); pools.append(pool)
        refs.append(reference_forward(x, edge_index, batch, raw_params, num_graphs))

    adj_b, pool_b, x_b = jnp.stack(adjs), jnp.stack(pools), jnp.stack(xs)
    ref_b = jnp.stack(refs)

    # ---- f32 path: all batches in one pallas_call, 2 grid steps of TB=4. ----
    packed_f32 = pack_params(raw_params, num_classes, jnp.float32)
    out_pad = jax.block_until_ready(
        egnn_forward_batched(adj_b, pool_b, x_b, packed_f32, grid_steps=grid_steps))
    out_b = out_pad[:, :, :num_classes]
    assert out_b.shape == (n_batches, num_graphs, num_classes)
    assert jnp.allclose(out_b, ref_b, atol=1e-4, rtol=1e-4), (out_b, ref_b)
    # Padded lanes must be exactly zero (zero-padded classifier columns).
    assert jnp.all(out_pad[:, :, num_classes:] == 0.0)

    # ---- bf16 MXU-input path (f32 accumulation): loose-tolerance check. ----
    packed_bf16 = pack_params(raw_params, num_classes, jnp.bfloat16)
    out_pad_bf16 = jax.block_until_ready(
        egnn_forward_batched(adj_b, pool_b, x_b, packed_bf16, grid_steps=grid_steps))
    out_bf16 = out_pad_bf16[:, :, :num_classes]
    assert jnp.allclose(out_bf16, ref_b, atol=0.25, rtol=0.1), (out_bf16, ref_b)
    assert jnp.all(out_pad_bf16[:, :, num_classes:] == 0.0)

    # ---- Module-equivalent single-call wrapper. ----
    out_single = jax.block_until_ready(
        egnn_forward(xs[0], edges[0], batches[0], raw_params,
                     num_graphs=num_graphs, num_classes=num_classes))
    assert out_single.shape == (num_graphs, num_classes)
    assert jnp.allclose(out_single, refs[0], atol=1e-4, rtol=1e-4), (out_single, refs[0])

    print("KERNEL_OK")
</pallas_src>

<mosaic_0001>
module attributes {stable_mosaic.version = 11 : i64} {
  func.func @egnn_kernel(%arg0: i32, %arg1: memref<1x64x64xf32, #tpu.memory_space<vmem>>, %arg2: memref<1x8x64xf32, #tpu.memory_space<vmem>>, %arg3: memref<1x64x4xf32, #tpu.memory_space<vmem>>, %arg4: memref<4x32xf32, #tpu.memory_space<vmem>>, %arg5: memref<4x32xf32, #tpu.memory_space<vmem>>, %arg6: memref<1x32xf32, #tpu.memory_space<vmem>>, %arg7: memref<32x32xf32, #tpu.memory_space<vmem>>, %arg8: memref<32x32xf32, #tpu.memory_space<vmem>>, %arg9: memref<1x32xf32, #tpu.memory_space<vmem>>, %arg10: memref<32x32xf32, #tpu.memory_space<vmem>>, %arg11: memref<32x32xf32, #tpu.memory_space<vmem>>, %arg12: memref<1x32xf32, #tpu.memory_space<vmem>>, %arg13: memref<32x128xf32, #tpu.memory_space<vmem>>, %arg14: memref<1x128xf32, #tpu.memory_space<vmem>>, %arg15: memref<1x8x128xf32, #tpu.memory_space<vmem>>) attributes {dimension_semantics = [#tpu.dimension_semantics<parallel>], iteration_bounds = array<i64: 2>, scalar_prefetch = 0 : i64, scratch_operands = 0 : i64, tpu.core_type = #tpu.core_type<tc>, window_params = [{transform_indices = @transform_0, window_bounds = array<i64: 1, 64, 64>}, {transform_indices = @transform_1, window_bounds = array<i64: 1, 8, 64>}, {transform_indices = @transform_2, window_bounds = array<i64: 1, 64, 4>}, {pipeline_mode = #tpu.pipeline_mode<synchronous>, transform_indices = @transform_3, window_bounds = array<i64: 4, 32>}, {pipeline_mode = #tpu.pipeline_mode<synchronous>, transform_indices = @transform_4, window_bounds = array<i64: 4, 32>}, {pipeline_mode = #tpu.pipeline_mode<synchronous>, transform_indices = @transform_5, window_bounds = array<i64: 1, 32>}, {pipeline_mode = #tpu.pipeline_mode<synchronous>, transform_indices = @transform_6, window_bounds = array<i64: 32, 32>}, {pipeline_mode = #tpu.pipeline_mode<synchronous>, transform_indices = @transform_7, window_bounds = array<i64: 32, 32>}, {pipeline_mode = #tpu.pipeline_mode<synchronous>, transform_indices = @transform_8, window_bounds = array<i64: 1, 32>}, {pipeline_mode = #tpu.pipeline_mode<synchronous>, transform_indices = @transform_9, window_bounds = array<i64: 32, 32>}, {pipeline_mode = #tpu.pipeline_mode<synchronous>, transform_indices = @transform_10, window_bounds = array<i64: 32, 32>}, {pipeline_mode = #tpu.pipeline_mode<synchronous>, transform_indices = @transform_11, window_bounds = array<i64: 1, 32>}, {pipeline_mode = #tpu.pipeline_mode<synchronous>, transform_indices = @transform_12, window_bounds = array<i64: 32, 128>}, {pipeline_mode = #tpu.pipeline_mode<synchronous>, transform_indices = @transform_13, window_bounds = array<i64: 1, 128>}, {transform_indices = @transform_14, window_bounds = array<i64: 1, 8, 128>}]} {
    %c0 = arith.constant 0 : index
    %c0_0 = arith.constant 0 : index
    %c0_1 = arith.constant 0 : index
    %0 = vector.load %arg1[%c0, %c0_0, %c0_1] : memref<1x64x64xf32, #tpu.memory_space<vmem>>, vector<1x64x64xf32>
    %1 = vector.shape_cast %0 : vector<1x64x64xf32> to vector<64x64xf32>
    %c0_2 = arith.constant 0 : index
    %c0_3 = arith.constant 0 : index
    %c0_4 = arith.constant 0 : index
    %2 = vector.load %arg2[%c0_2, %c0_3, %c0_4] : memref<1x8x64xf32, #tpu.memory_space<vmem>>, vector<1x8x64xf32>
    %3 = vector.shape_cast %2 : vector<1x8x64xf32> to vector<8x64xf32>
    %c0_5 = arith.constant 0 : index
    %c0_6 = arith.constant 0 : index
    %c0_7 = arith.constant 0 : index
    %4 = vector.load %arg3[%c0_5, %c0_6, %c0_7] : memref<1x64x4xf32, #tpu.memory_space<vmem>>, vector<1x64x4xf32>
    %5 = vector.shape_cast %4 : vector<1x64x4xf32> to vector<64x4xf32>
    %cst = arith.constant dense<0.000000e+00> : vector<64x4xf32>
    %6 = tpu.matmul %1, %5, %cst {dimension_numbers = #tpu.dot_dimension_numbers<[1], [0], [0], [1], [0, 0, 1, 1], [], []>} : vector<64x64xf32>, vector<64x4xf32>, vector<64x4xf32> -> vector<64x4xf32>
    %c0_8 = arith.constant 0 : index
    %c0_9 = arith.constant 0 : index
    %7 = vector.load %arg4[%c0_8, %c0_9] : memref<4x32xf32, #tpu.memory_space<vmem>>, vector<4x32xf32>
    %cst_10 = arith.constant dense<0.000000e+00> : vector<64x32xf32>
    %8 = tpu.matmul %6, %7, %cst_10 {dimension_numbers = #tpu.dot_dimension_numbers<[1], [0], [0], [1], [0, 0, 1, 1], [], []>} : vector<64x4xf32>, vector<4x32xf32>, vector<64x32xf32> -> vector<64x32xf32>
    %c0_11 = arith.constant 0 : index
    %c0_12 = arith.constant 0 : index
    %9 = vector.load %arg5[%c0_11, %c0_12] : memref<4x32xf32, #tpu.memory_space<vmem>>, vector<4x32xf32>
    %cst_13 = arith.constant dense<0.000000e+00> : vector<64x32xf32>
    %10 = tpu.matmul %5, %9, %cst_13 {dimension_numbers = #tpu.dot_dimension_numbers<[1], [0], [0], [1], [0, 0, 1, 1], [], []>} : vector<64x4xf32>, vector<4x32xf32>, vector<64x32xf32> -> vector<64x32xf32>
    %11 = arith.addf %8, %10 : vector<64x32xf32>
    %c0_14 = arith.constant 0 : index
    %c0_15 = arith.constant 0 : index
    %12 = vector.load %arg6[%c0_14, %c0_15] : memref<1x32xf32, #tpu.memory_space<vmem>>, vector<1x32xf32>
    %13 = vector.broadcast %12 : vector<1x32xf32> to vector<64x32xf32>
    %14 = arith.addf %11, %13 : vector<64x32xf32>
    %cst_16 = arith.constant 0.000000e+00 : f32
    %15 = vector.broadcast %cst_16 : f32 to vector<64x32xf32>
    %16 = arith.maximumf %14, %15 : vector<64x32xf32>
    %cst_17 = arith.constant dense<0.000000e+00> : vector<64x32xf32>
    %17 = tpu.matmul %1, %16, %cst_17 {dimension_numbers = #tpu.dot_dimension_numbers<[1], [0], [0], [1], [0, 0, 1, 1], [], []>} : vector<64x64xf32>, vector<64x32xf32>, vector<64x32xf32> -> vector<64x32xf32>
    %c0_18 = arith.constant 0 : index
    %c0_19 = arith.constant 0 : index
    %18 = vector.load %arg7[%c0_18, %c0_19] : memref<32x32xf32, #tpu.memory_space<vmem>>, vector<32x32xf32>
    %cst_20 = arith.constant dense<0.000000e+00> : vector<64x32xf32>
    %19 = tpu.matmul %17, %18, %cst_20 {dimension_numbers = #tpu.dot_dimension_numbers<[1], [0], [0], [1], [0, 0, 1, 1], [], []>} : vector<64x32xf32>, vector<32x32xf32>, vector<64x32xf32> -> vector<64x32xf32>
    %c0_21 = arith.constant 0 : index
    %c0_22 = arith.constant 0 : index
    %20 = vector.load %arg8[%c0_21, %c0_22] : memref<32x32xf32, #tpu.memory_space<vmem>>, vector<32x32xf32>
    %cst_23 = arith.constant dense<0.000000e+00> : vector<64x32xf32>
    %21 = tpu.matmul %16, %20, %cst_23 {dimension_numbers = #tpu.dot_dimension_numbers<[1], [0], [0], [1], [0, 0, 1, 1], [], []>} : vector<64x32xf32>, vector<32x32xf32>, vector<64x32xf32> -> vector<64x32xf32>
    %22 = arith.addf %19, %21 : vector<64x32xf32>
    %c0_24 = arith.constant 0 : index
    %c0_25 = arith.constant 0 : index
    %23 = vector.load %arg9[%c0_24, %c0_25] : memref<1x32xf32, #tpu.memory_space<vmem>>, vector<1x32xf32>
    %24 = vector.broadcast %23 : vector<1x32xf32> to vector<64x32xf32>
    %25 = arith.addf %22, %24 : vector<64x32xf32>
    %cst_26 = arith.constant 0.000000e+00 : f32
    %26 = vector.broadcast %cst_26 : f32 to vector<64x32xf32>
    %27 = arith.maximumf %25, %26 : vector<64x32xf32>
    %cst_27 = arith.constant dense<0.000000e+00> : vector<64x32xf32>
    %28 = tpu.matmul %1, %27, %cst_27 {dimension_numbers = #tpu.dot_dimension_numbers<[1], [0], [0], [1], [0, 0, 1, 1], [], []>} : vector<64x64xf32>, vector<64x32xf32>, vector<64x32xf32> -> vector<64x32xf32>
    %c0_28 = arith.constant 0 : index
    %c0_29 = arith.constant 0 : index
    %29 = vector.load %arg10[%c0_28, %c0_29] : memref<32x32xf32, #tpu.memory_space<vmem>>, vector<32x32xf32>
    %cst_30 = arith.constant dense<0.000000e+00> : vector<64x32xf32>
    %30 = tpu.matmul %28, %29, %cst_30 {dimension_numbers = #tpu.dot_dimension_numbers<[1], [0], [0], [1], [0, 0, 1, 1], [], []>} : vector<64x32xf32>, vector<32x32xf32>, vector<64x32xf32> -> vector<64x32xf32>
    %c0_31 = arith.constant 0 : index
    %c0_32 = arith.constant 0 : index
    %31 = vector.load %arg11[%c0_31, %c0_32] : memref<32x32xf32, #tpu.memory_space<vmem>>, vector<32x32xf32>
    %cst_33 = arith.constant dense<0.000000e+00> : vector<64x32xf32>
    %32 = tpu.matmul %27, %31, %cst_33 {dimension_numbers = #tpu.dot_dimension_numbers<[1], [0], [0], [1], [0, 0, 1, 1], [], []>} : vector<64x32xf32>, vector<32x32xf32>, vector<64x32xf32> -> vector<64x32xf32>
    %33 = arith.addf %30, %32 : vector<64x32xf32>
    %c0_34 = arith.constant 0 : index
    %c0_35 = arith.constant 0 : index
    %34 = vector.load %arg12[%c0_34, %c0_35] : memref<1x32xf32, #tpu.memory_space<vmem>>, vector<1x32xf32>
    %35 = vector.broadcast %34 : vector<1x32xf32> to vector<64x32xf32>
    %36 = arith.addf %33, %35 : vector<64x32xf32>
    %cst_36 = arith.constant dense<0.000000e+00> : vector<8x32xf32>
    %37 = tpu.matmul %3, %36, %cst_36 {dimension_numbers = #tpu.dot_dimension_numbers<[1], [0], [0], [1], [0, 0, 1, 1], [], []>} : vector<8x64xf32>, vector<64x32xf32>, vector<8x32xf32> -> vector<8x32xf32>
    %c0_37 = arith.constant 0 : index
    %c0_38 = arith.constant 0 : index
    %38 = vector.load %arg13[%c0_37, %c0_38] : memref<32x128xf32, #tpu.memory_space<vmem>>, vector<32x128xf32>
    %cst_39 = arith.constant dense<0.000000e+00> : vector<8x128xf32>
    %39 = tpu.matmul %37, %38, %cst_39 {dimension_numbers = #tpu.dot_dimension_numbers<[1], [0], [0], [1], [0, 0, 1, 1], [], []>} : vector<8x32xf32>, vector<32x128xf32>, vector<8x128xf32> -> vector<8x128xf32>
    %c0_40 = arith.constant 0 : index
    %c0_41 = arith.constant 0 : index
    %40 = vector.load %arg14[%c0_40, %c0_41] : memref<1x128xf32, #tpu.memory_space<vmem>>, vector<1x128xf32>
    %41 = vector.broadcast %40 : vector<1x128xf32> to vector<8x128xf32>
    %42 = arith.addf %39, %41 : vector<8x128xf32>
    %c0_42 = arith.constant 0 : index
    %c0_43 = arith.constant 0 : index
    %c0_44 = arith.constant 0 : index
    %43 = vector.load %arg15[%c0_42, %c0_43, %c0_44] : memref<1x8x128xf32, #tpu.memory_space<vmem>>, vector<1x8x128xf32>
    %44 = vector.shape_cast %43 : vector<1x8x128xf32> to vector<8x128xf32>
    %45 = vector.shape_cast %42 : vector<8x128xf32> to vector<1x8x128xf32>
    tpu.vector_store %arg15[%c0_42, %c0_43, %c0_44], %45 {strides = array<i32>} : memref<1x8x128xf32, #tpu.memory_space<vmem>>, vector<1x8x128xf32>,
    return
  }
  func.func @transform_0(%arg0: i32) -> (i32, i32, i32) {
    %c0_i32 = arith.constant 0 : i32
    %c0_i32_0 = arith.constant 0 : i32
    %c0_i32_1 = arith.constant 0 : i32
    return %arg0, %c0_i32, %c0_i32_0 : i32, i32, i32
  }
  func.func @transform_1(%arg0: i32) -> (i32, i32, i32) {
    %c0_i32 = arith.constant 0 : i32
    %c0_i32_0 = arith.constant 0 : i32
    %c0_i32_1 = arith.constant 0 : i32
    return %arg0, %c0_i32, %c0_i32_0 : i32, i32, i32
  }
  func.func @transform_2(%arg0: i32) -> (i32, i32, i32) {
    %c0_i32 = arith.constant 0 : i32
    %c0_i32_0 = arith.constant 0 : i32
    %c0_i32_1 = arith.constant 0 : i32
    return %arg0, %c0_i32, %c0_i32_0 : i32, i32, i32
  }
  func.func @transform_3(%arg0: i32) -> (i32, i32) {
    %c0_i32 = arith.constant 0 : i32
    %c0_i32_0 = arith.constant 0 : i32
    %c0_i32_1 = arith.constant 0 : i32
    return %c0_i32, %c0_i32_0 : i32, i32
  }
  func.func @transform_4(%arg0: i32) -> (i32, i32) {
    %c0_i32 = arith.constant 0 : i32
    %c0_i32_0 = arith.constant 0 : i32
    %c0_i32_1 = arith.constant 0 : i32
    return %c0_i32, %c0_i32_0 : i32, i32
  }
  func.func @transform_5(%arg0: i32) -> (i32, i32) {
    %c0_i32 = arith.constant 0 : i32
    %c0_i32_0 = arith.constant 0 : i32
    %c0_i32_1 = arith.constant 0 : i32
    return %c0_i32, %c0_i32_0 : i32, i32
  }
  func.func @transform_6(%arg0: i32) -> (i32, i32) {
    %c0_i32 = arith.constant 0 : i32
    %c0_i32_0 = arith.constant 0 : i32
    %c0_i32_1 = arith.constant 0 : i32
    return %c0_i32, %c0_i32_0 : i32, i32
  }
  func.func @transform_7(%arg0: i32) -> (i32, i32) {
    %c0_i32 = arith.constant 0 : i32
    %c0_i32_0 = arith.constant 0 : i32
    %c0_i32_1 = arith.constant 0 : i32
    return %c0_i32, %c0_i32_0 : i32, i32
  }
  func.func @transform_8(%arg0: i32) -> (i32, i32) {
    %c0_i32 = arith.constant 0 : i32
    %c0_i32_0 = arith.constant 0 : i32
    %c0_i32_1 = arith.constant 0 : i32
    return %c0_i32, %c0_i32_0 : i32, i32
  }
  func.func @transform_9(%arg0: i32) -> (i32, i32) {
    %c0_i32 = arith.constant 0 : i32
    %c0_i32_0 = arith.constant 0 : i32
    %c0_i32_1 = arith.constant 0 : i32
    return %c0_i32, %c0_i32_0 : i32, i32
  }
  func.func @transform_10(%arg0: i32) -> (i32, i32) {
    %c0_i32 = arith.constant 0 : i32
    %c0_i32_0 = arith.constant 0 : i32
    %c0_i32_1 = arith.constant 0 : i32
    return %c0_i32, %c0_i32_0 : i32, i32
  }
  func.func @transform_11(%arg0: i32) -> (i32, i32) {
    %c0_i32 = arith.constant 0 : i32
    %c0_i32_0 = arith.constant 0 : i32
    %c0_i32_1 = arith.constant 0 : i32
    return %c0_i32, %c0_i32_0 : i32, i32
  }
  func.func @transform_12(%arg0: i32) -> (i32, i32) {
    %c0_i32 = arith.constant 0 : i32
    %c0_i32_0 = arith.constant 0 : i32
    %c0_i32_1 = arith.constant 0 : i32
    return %c0_i32, %c0_i32_0 : i32, i32
  }
  func.func @transform_13(%arg0: i32) -> (i32, i32) {
    %c0_i32 = arith.constant 0 : i32
    %c0_i32_0 = arith.constant 0 : i32
    %c0_i32_1 = arith.constant 0 : i32
    return %c0_i32, %c0_i32_0 : i32, i32
  }
  func.func @transform_14(%arg0: i32) -> (i32, i32, i32) {
    %c0_i32 = arith.constant 0 : i32
    %c0_i32_0 = arith.constant 0 : i32
    %c0_i32_1 = arith.constant 0 : i32
    return %arg0, %c0_i32, %c0_i32_0 : i32, i32, i32
  }
}

</mosaic_0001>

<llo_original>
// kernel: egnn_forward_batched.1
$region0: #{egnn_forward_batched.1}
  #allocation0 [shape = 'u32[]', space=smem, size = 0x4, offset = 0x4, fixed_abs, tag = 'smem constant byte address 0x4 - core index']
  #allocation1 [shape = 'u32[72,128]{1,0:T(1,128)}', space=vmem, size = 0x9000, scoped, tag = 'internal scratch']
  %s0 = inlined_call_operand.vmem [shape: f32[2,64,64], index: 0, kind: input, shape index: {}]
  %s1 = inlined_call_operand.vmem [shape: f32[2,8,64], index: 1, kind: input, shape index: {}]
  %s2 = inlined_call_operand.vmem [shape: f32[2,64,4], index: 2, kind: input, shape index: {}]
  %s3 = inlined_call_operand.vmem [shape: f32[4,32], index: 3, kind: input, shape index: {}]
  %s4 = inlined_call_operand.vmem [shape: f32[4,32], index: 4, kind: input, shape index: {}]
  %s5 = inlined_call_operand.vmem [shape: f32[1,32], index: 5, kind: input, shape index: {}]
  %s6 = inlined_call_operand.vmem [shape: f32[32,32], index: 6, kind: input, shape index: {}]
  %s7 = inlined_call_operand.vmem [shape: f32[32,32], index: 7, kind: input, shape index: {}]
  %s8 = inlined_call_operand.vmem [shape: f32[1,32], index: 8, kind: input, shape index: {}]
  %s9 = inlined_call_operand.vmem [shape: f32[32,32], index: 9, kind: input, shape index: {}]
  %s10 = inlined_call_operand.vmem [shape: f32[32,32], index: 10, kind: input, shape index: {}]
  %s11 = inlined_call_operand.vmem [shape: f32[1,32], index: 11, kind: input, shape index: {}]
  %s12 = inlined_call_operand.vmem [shape: f32[32,128], index: 12, kind: input, shape index: {}]
  %s13 = inlined_call_operand.vmem [shape: f32[1,128], index: 13, kind: input, shape index: {}]
  %s14 = inlined_call_operand.hbm [shape: f32[2,8,128], index: 14, kind: output, shape index: {}]
  %s15 = sld [smem:[#allocation0]]
  $region89: #{egnn_forward_batched.1} parent=0
    _
  %s17 = ssub.s32 1, %s15
  %s18 = scalar_select 0, %s17, %s15
  $region1: #{egnn_forward_batched.1} parent=0
    #allocation2 [shape = 'u8[8192]{0}', space=vmem, size = 0x2000, scoped, tag = 'output window, operand 0']
    #allocation3 [shape = 's32[2]{0}', space=sflag, size = 0x8, scoped, tag = 'scoped memory for egnn_forward_batched.1']
    %19 = vsyncpa [#allocation3], 0
    %s20 = scalar_lea.sflag [#allocation3], 1
    %21 = vsyncpa %s20, 0
    loop: start=0, step=1, limit=4
    $region2: #{egnn_forward_batched.1} parent=1 // loop_pre_header
      _
    $region3: #{egnn_forward_batched.1} parent=1 // loop_header
      %s23 = sphi 0, %s27
      %p24 = scmp.ge.s32.totalorder %s23, 4
      %s33 = sphi 0, %s35
      %s36 = sphi 0, %s33
      %s37 = sphi 0, %s36
      %s53 = sphi 0, %s37
      %s59 = sphi 0, %s61
      %s62 = sphi 0, %s59
      %s63 = sphi 0, %s62
      %s79 = sphi 0, %s63
      %s85 = sphi 0, %s87
      %s88 = sphi 0, %s85
      %s89 = sphi 0, %s88
      %s105 = sphi 0, %s89
      %s109 = sphi 0, %s109
      %s111 = sphi 0, %s109
      %s112 = sphi 0, %s111
      %s126 = sphi 0, %s112
      %s130 = sphi 0, %s130
      %s132 = sphi 0, %s130
      %s133 = sphi 0, %s132
      %s147 = sphi 0, %s133
      %s151 = sphi 0, %s151
      %s153 = sphi 0, %s151
      %s154 = sphi 0, %s153
      %s168 = sphi 0, %s154
      %s172 = sphi 0, %s172
      %s174 = sphi 0, %s172
      %s175 = sphi 0, %s174
      %s189 = sphi 0, %s175
      %s193 = sphi 0, %s193
      %s195 = sphi 0, %s193
      %s196 = sphi 0, %s195
      %s210 = sphi 0, %s196
      %s214 = sphi 0, %s214
      %s216 = sphi 0, %s214
      %s217 = sphi 0, %s216
      %s231 = sphi 0, %s217
      %s235 = sphi 0, %s235
      %s237 = sphi 0, %s235
      %s238 = sphi 0, %s237
      %s252 = sphi 0, %s238
      %s256 = sphi 0, %s256
      %s258 = sphi 0, %s256
      %s259 = sphi 0, %s258
      %s273 = sphi 0, %s259
      %s277 = sphi 0, %s277
      %s279 = sphi 0, %s277
      %s280 = sphi 0, %s279
      %s294 = sphi 0, %s280
      %s298 = sphi 0, %s298
      %s300 = sphi 0, %s298
      %s301 = sphi 0, %s300
      %s315 = sphi 0, %s301
      %s319 = sphi 0, %s319
      %s321 = sphi 0, %s319
      %s322 = sphi 0, %s321
      %s336 = sphi 0, %s322
      %s342 = sphi 0, %s344
      %s345 = sphi 0, %s342
      %s346 = sphi 0, %s345
      %s362 = sphi 0, %s346
    $region4: #{egnn_forward_batched.1} parent=1 // loop_header_branch
      %26 = sbr.rel (%p24) target = $region8
    $region5: #{egnn_forward_batched.1} parent=1 // loop_body
      %s28 = ssub.s32 %s23, 1
      %s29 = ssub.s32 %s23, 2
      %s30 = sadd.s32 %s23, 1
      %s31 = ssub.s32 %s23, %s30
      %p32 = scmp.eq.s32.totalorder %s31, 0
      %s34 = sadd.s32 %s33, 1
      %s35 = scalar_select %p32, %s33, %s34
      %p38 = pneg %p32
      %p39 = scmp.eq.s32.totalorder %s23, 1
      %p40 = por %p38, %p39
      %p41 = scmp.ne.s32.totalorder %s33, %s36
      %p42 = scmp.eq.s32.totalorder %s23, 0
      %p43 = por %p41, %p42
      %p44 = scmp.ne.s32.totalorder %s33, %s36
      %p45 = scmp.eq.s32.totalorder %s28, 1
      %p46 = por %p44, %p45
      %p47 = scmp.ne.s32.totalorder %s36, %s37
      %p48 = scmp.eq.s32.totalorder %s28, 0
      %p49 = por %p47, %p48
      %p50 = scmp.ne.s32.totalorder %s36, %s37
      %p51 = scmp.eq.s32.totalorder %s29, 1
      %p52 = por %p50, %p51
      %p54 = scmp.ne.s32.totalorder %s37, %s53
      %p55 = scmp.eq.s32.totalorder %s29, 0
      %p56 = por %p54, %p55
      %s57 = ssub.s32 %s23, %s30
      %p58 = scmp.eq.s32.totalorder %s57, 0
      %s60 = sadd.s32 %s59, 1
      %s61 = scalar_select %p58, %s59, %s60
      %p64 = pneg %p58
      %p65 = scmp.eq.s32.totalorder %s23, 1
      %p66 = por %p64, %p65
      %p67 = scmp.ne.s32.totalorder %s59, %s62
      %p68 = scmp.eq.s32.totalorder %s23, 0
      %p69 = por %p67, %p68
      %p70 = scmp.ne.s32.totalorder %s59, %s62
      %p71 = scmp.eq.s32.totalorder %s28, 1
      %p72 = por %p70, %p71
      %p73 = scmp.ne.s32.totalorder %s62, %s63
      %p74 = scmp.eq.s32.totalorder %s28, 0
      %p75 = por %p73, %p74
      %p76 = scmp.ne.s32.totalorder %s62, %s63
      %p77 = scmp.eq.s32.totalorder %s29, 1
      %p78 = por %p76, %p77
      %p80 = scmp.ne.s32.totalorder %s63, %s79
      %p81 = scmp.eq.s32.totalorder %s29, 0
      %p82 = por %p80, %p81
      %s83 = ssub.s32 %s23, %s30
      %p84 = scmp.eq.s32.totalorder %s83, 0
      %s86 = sadd.s32 %s85, 1
      %s87 = scalar_select %p84, %s85, %s86
      %p90 = pneg %p84
      %p91 = scmp.eq.s32.totalorder %s23, 1
      %p92 = por %p90, %p91
      %p93 = scmp.ne.s32.totalorder %s85, %s88
      %p94 = scmp.eq.s32.totalorder %s23, 0
      %p95 = por %p93, %p94
      %p96 = scmp.ne.s32.totalorder %s85, %s88
      %p97 = scmp.eq.s32.totalorder %s28, 1
      %p98 = por %p96, %p97
      %p99 = scmp.ne.s32.totalorder %s88, %s89
      %p100 = scmp.eq.s32.totalorder %s28, 0
      %p101 = por %p99, %p100
      %p102 = scmp.ne.s32.totalorder %s88, %s89
      %p103 = scmp.eq.s32.totalorder %s29, 1
      %p104 = por %p102, %p103
      %p106 = scmp.ne.s32.totalorder %s89, %s105
      %p107 = scmp.eq.s32.totalorder %s29, 0
      %p108 = por %p106, %p107
      %s110 = sadd.s32 %s109, 1
      %p113 = scmp.eq.s32.totalorder %s23, 1
      %p114 = scmp.ne.s32.totalorder %s109, %s111
      %p115 = scmp.eq.s32.totalorder %s23, 0
      %p116 = por %p114, %p115
      %p117 = scmp.ne.s32.totalorder %s109, %s111
      %p118 = scmp.eq.s32.totalorder %s28, 1
      %p119 = por %p117, %p118
      %p120 = scmp.ne.s32.totalorder %s111, %s112
      %p121 = scmp.eq.s32.totalorder %s28, 0
      %p122 = por %p120, %p121
      %p123 = scmp.ne.s32.totalorder %s111, %s112
      %p124 = scmp.eq.s32.totalorder %s29, 1
      %p125 = por %p123, %p124
      %p127 = scmp.ne.s32.totalorder %s112, %s126
      %p128 = scmp.eq.s32.totalorder %s29, 0
      %p129 = por %p127, %p128
      %s131 = sadd.s32 %s130, 1
      %p134 = scmp.eq.s32.totalorder %s23, 1
      %p135 = scmp.ne.s32.totalorder %s130, %s132
      %p136 = scmp.eq.s32.totalorder %s23, 0
      %p137 = por %p135, %p136
      %p138 = scmp.ne.s32.totalorder %s130, %s132
      %p139 = scmp.eq.s32.totalorder %s28, 1
      %p140 = por %p138, %p139
      %p141 = scmp.ne.s32.totalorder %s132, %s133
      %p142 = scmp.eq.s32.totalorder %s28, 0
      %p143 = por %p141, %p142
      %p144 = scmp.ne.s32.totalorder %s132, %s133
      %p145 = scmp.eq.s32.totalorder %s29, 1
      %p146 = por %p144, %p145
      %p148 = scmp.ne.s32.totalorder %s133, %s147
      %p149 = scmp.eq.s32.totalorder %s29, 0
      %p150 = por %p148, %p149
      %s152 = sadd.s32 %s151, 1
      %p155 = scmp.eq.s32.totalorder %s23, 1
      %p156 = scmp.ne.s32.totalorder %s151, %s153
      %p157 = scmp.eq.s32.totalorder %s23, 0
      %p158 = por %p156, %p157
      %p159 = scmp.ne.s32.totalorder %s151, %s153
      %p160 = scmp.eq.s32.totalorder %s28, 1
      %p161 = por %p159, %p160
      %p162 = scmp.ne.s32.totalorder %s153, %s154
      %p163 = scmp.eq.s32.totalorder %s28, 0
      %p164 = por %p162, %p163
      %p165 = scmp.ne.s32.totalorder %s153, %s154
      %p166 = scmp.eq.s32.totalorder %s29, 1
      %p167 = por %p165, %p166
      %p169 = scmp.ne.s32.totalorder %s154, %s168
      %p170 = scmp.eq.s32.totalorder %s29, 0
      %p171 = por %p169, %p170
      %s173 = sadd.s32 %s172, 1
      %p176 = scmp.eq.s32.totalorder %s23, 1
      %p177 = scmp.ne.s32.totalorder %s172, %s174
      %p178 = scmp.eq.s32.totalorder %s23, 0
      %p179 = por %p177, %p178
      %p180 = scmp.ne.s32.totalorder %s172, %s174
      %p181 = scmp.eq.s32.totalorder %s28, 1
      %p182 = por %p180, %p181
      %p183 = scmp.ne.s32.totalorder %s174, %s175
      %p184 = scmp.eq.s32.totalorder %s28, 0
      %p185 = por %p183, %p184
      %p186 = scmp.ne.s32.totalorder %s174, %s175
      %p187 = scmp.eq.s32.totalorder %s29, 1
      %p188 = por %p186, %p187
      %p190 = scmp.ne.s32.totalorder %s175, %s189
      %p191 = scmp.eq.s32.totalorder %s29, 0
      %p192 = por %p190, %p191
      %s194 = sadd.s32 %s193, 1
      %p197 = scmp.eq.s32.totalorder %s23, 1
      %p198 = scmp.ne.s32.totalorder %s193, %s195
      %p199 = scmp.eq.s32.totalorder %s23, 0
      %p200 = por %p198, %p199
      %p201 = scmp.ne.s32.totalorder %s193, %s195
      %p202 = scmp.eq.s32.totalorder %s28, 1
      %p203 = por %p201, %p202
      %p204 = scmp.ne.s32.totalorder %s195, %s196
      %p205 = scmp.eq.s32.totalorder %s28, 0
      %p206 = por %p204, %p205
      %p207 = scmp.ne.s32.totalorder %s195, %s196
      %p208 = scmp.eq.s32.totalorder %s29, 1
      %p209 = por %p207, %p208
      %p211 = scmp.ne.s32.totalorder %s196, %s210
      %p212 = scmp.eq.s32.totalorder %s29, 0
      %p213 = por %p211, %p212
      %s215 = sadd.s32 %s214, 1
      %p218 = scmp.eq.s32.totalorder %s23, 1
      %p219 = scmp.ne.s32.totalorder %s214, %s216
      %p220 = scmp.eq.s32.totalorder %s23, 0
      %p221 = por %p219, %p220
      %p222 = scmp.ne.s32.totalorder %s214, %s216
      %p223 = scmp.eq.s32.totalorder %s28, 1
      %p224 = por %p222, %p223
      %p225 = scmp.ne.s32.totalorder %s216, %s217
      %p226 = scmp.eq.s32.totalorder %s28, 0
      %p227 = por %p225, %p226
      %p228 = scmp.ne.s32.totalorder %s216, %s217
      %p229 = scmp.eq.s32.totalorder %s29, 1
      %p230 = por %p228, %p229
      %p232 = scmp.ne.s32.totalorder %s217, %s231
      %p233 = scmp.eq.s32.totalorder %s29, 0
      %p234 = por %p232, %p233
      %s236 = sadd.s32 %s235, 1
      %p239 = scmp.eq.s32.totalorder %s23, 1
      %p240 = scmp.ne.s32.totalorder %s235, %s237
      %p241 = scmp.eq.s32.totalorder %s23, 0
      %p242 = por %p240, %p241
      %p243 = scmp.ne.s32.totalorder %s235, %s237
      %p244 = scmp.eq.s32.totalorder %s28, 1
      %p245 = por %p243, %p244
      %p246 = scmp.ne.s32.totalorder %s237, %s238
      %p247 = scmp.eq.s32.totalorder %s28, 0
      %p248 = por %p246, %p247
      %p249 = scmp.ne.s32.totalorder %s237, %s238
      %p250 = scmp.eq.s32.totalorder %s29, 1
      %p251 = por %p249, %p250
      %p253 = scmp.ne.s32.totalorder %s238, %s252
      %p254 = scmp.eq.s32.totalorder %s29, 0
      %p255 = por %p253, %p254
      %s257 = sadd.s32 %s256, 1
      %p260 = scmp.eq.s32.totalorder %s23, 1
      %p261 = scmp.ne.s32.totalorder %s256, %s258
      %p262 = scmp.eq.s32.totalorder %s23, 0
      %p263 = por %p261, %p262
      %p264 = scmp.ne.s32.totalorder %s256, %s258
      %p265 = scmp.eq.s32.totalorder %s28, 1
      %p266 = por %p264, %p265
      %p267 = scmp.ne.s32.totalorder %s258, %s259
      %p268 = scmp.eq.s32.totalorder %s28, 0
      %p269 = por %p267, %p268
      %p270 = scmp.ne.s32.totalorder %s258, %s259
      %p271 = scmp.eq.s32.totalorder %s29, 1
      %p272 = por %p270, %p271
      %p274 = scmp.ne.s32.totalorder %s259, %s273
      %p275 = scmp.eq.s32.totalorder %s29, 0
      %p276 = por %p274, %p275
      %s278 = sadd.s32 %s277, 1
      %p281 = scmp.eq.s32.totalorder %s23, 1
      %p282 = scmp.ne.s32.totalorder %s277, %s279
      %p283 = scmp.eq.s32.totalorder %s23, 0
      %p284 = por %p282, %p283
      %p285 = scmp.ne.s32.totalorder %s277, %s279
      %p286 = scmp.eq.s32.totalorder %s28, 1
      %p287 = por %p285, %p286
      %p288 = scmp.ne.s32.totalorder %s279, %s280
      %p289 = scmp.eq.s32.totalorder %s28, 0
      %p290 = por %p288, %p289
      %p291 = scmp.ne.s32.totalorder %s279, %s280
      %p292 = scmp.eq.s32.totalorder %s29, 1
      %p293 = por %p291, %p292
      %p295 = scmp.ne.s32.totalorder %s280, %s294
      %p296 = scmp.eq.s32.totalorder %s29, 0
      %p297 = por %p295, %p296
      %s299 = sadd.s32 %s298, 1
      %p302 = scmp.eq.s32.totalorder %s23, 1
      %p303 = scmp.ne.s32.totalorder %s298, %s300
      %p304 = scmp.eq.s32.totalorder %s23, 0
      %p305 = por %p303, %p304
      %p306 = scmp.ne.s32.totalorder %s298, %s300
      %p307 = scmp.eq.s32.totalorder %s28, 1
      %p308 = por %p306, %p307
      %p309 = scmp.ne.s32.totalorder %s300, %s301
      %p310 = scmp.eq.s32.totalorder %s28, 0
      %p311 = por %p309, %p310
      %p312 = scmp.ne.s32.totalorder %s300, %s301
      %p313 = scmp.eq.s32.totalorder %s29, 1
      %p314 = por %p312, %p313
      %p316 = scmp.ne.s32.totalorder %s301, %s315
      %p317 = scmp.eq.s32.totalorder %s29, 0
      %p318 = por %p316, %p317
      %s320 = sadd.s32 %s319, 1
      %p323 = scmp.eq.s32.totalorder %s23, 1
      %p324 = scmp.ne.s32.totalorder %s319, %s321
      %p325 = scmp.eq.s32.totalorder %s23, 0
      %p326 = por %p324, %p325
      %p327 = scmp.ne.s32.totalorder %s319, %s321
      %p328 = scmp.eq.s32.totalorder %s28, 1
      %p329 = por %p327, %p328
      %p330 = scmp.ne.s32.totalorder %s321, %s322
      %p331 = scmp.eq.s32.totalorder %s28, 0
      %p332 = por %p330, %p331
      %p333 = scmp.ne.s32.totalorder %s321, %s322
      %p334 = scmp.eq.s32.totalorder %s29, 1
      %p335 = por %p333, %p334
      %p337 = scmp.ne.s32.totalorder %s322, %s336
      %p338 = scmp.eq.s32.totalorder %s29, 0
      %p339 = por %p337, %p338
      %s340 = ssub.s32 %s23, %s30
      %p341 = scmp.eq.s32.totalorder %s340, 0
      %s343 = sadd.s32 %s342, 1
      %s344 = scalar_select %p341, %s342, %s343
      %p347 = pneg %p341
      %p348 = scmp.eq.s32.totalorder %s23, 1
      %p349 = por %p347, %p348
      %p350 = scmp.ne.s32.totalorder %s342, %s345
      %p351 = scmp.eq.s32.totalorder %s23, 0
      %p352 = por %p350, %p351
      %p353 = scmp.ne.s32.totalorder %s342, %s345
      %p354 = scmp.eq.s32.totalorder %s28, 1
      %p355 = por %p353, %p354
      %p356 = scmp.ne.s32.totalorder %s345, %s346
      %p357 = scmp.eq.s32.totalorder %s28, 0
      %p358 = por %p356, %p357
      %p359 = scmp.ne.s32.totalorder %s345, %s346
      %p360 = scmp.eq.s32.totalorder %s29, 1
      %p361 = por %p359, %p360
      %p363 = scmp.ne.s32.totalorder %s346, %s362
      %p364 = scmp.eq.s32.totalorder %s29, 0
      %p365 = por %p363, %p364
      %p366 = scmp.le.s32.totalorder 1, %s23
      %p367 = scmp.lt.s32.totalorder %s23, 3
      %p368 = pnand %p366, %p367
      %p369 = pneg %p368
      // Predicated region
      $region9: #{egnn_forward_batched.1} parent=5 // pred_check
        _
      $region10: #{egnn_forward_batched.1} parent=5 // pred_check_branch
        %371 = sbr.rel (%p368) target = $region12
      $region11: #{egnn_forward_batched.1} parent=5 // pred_region
        %s372 = ssub.s32 %s23, 1
        // Predicated region
        $region13: #{egnn_forward_batched.1} parent=11 // pred_check
          %p373 = pneg %p122
        $region14: #{egnn_forward_batched.1} parent=11 // pred_check_branch
          %375 = sbr.rel (%p373) target = $region16
        $region15: #{egnn_forward_batched.1} parent=11 // pred_region
          _
        $region16: #{egnn_forward_batched.1} parent=11 // pred_fallthru
          _
        // Predicated region
        $region17: #{egnn_forward_batched.1} parent=11 // pred_check
          %p376 = pneg %p143
        $region18: #{egnn_forward_batched.1} parent=11 // pred_check_branch
          %378 = sbr.rel (%p376) target = $region20
        $region19: #{egnn_forward_batched.1} parent=11 // pred_region
          _
        $region20: #{egnn_forward_batched.1} parent=11 // pred_fallthru
          _
        // Predicated region
        $region21: #{egnn_forward_batched.1} parent=11 // pred_check
          %p379 = pneg %p164
        $region22: #{egnn_forward_batched.1} parent=11 // pred_check_branch
          %381 = sbr.rel (%p379) target = $region24
        $region23: #{egnn_forward_batched.1} parent=11 // pred_region
          _
        $region24: #{egnn_forward_batched.1} parent=11 // pred_fallthru
          _
        // Predicated region
        $region25: #{egnn_forward_batched.1} parent=11 // pred_check
          %p382 = pneg %p185
        $region26: #{egnn_forward_batched.1} parent=11 // pred_check_branch
          %384 = sbr.rel (%p382) target = $region28
        $region27: #{egnn_forward_batched.1} parent=11 // pred_region
          _
        $region28: #{egnn_forward_batched.1} parent=11 // pred_fallthru
          _
        // Predicated region
        $region29: #{egnn_forward_batched.1} parent=11 // pred_check
          %p385 = pneg %p206
        $region30: #{egnn_forward_batched.1} parent=11 // pred_check_branch
          %387 = sbr.rel (%p385) target = $region32
        $region31: #{egnn_forward_batched.1} parent=11 // pred_region
          _
        $region32: #{egnn_forward_batched.1} parent=11 // pred_fallthru
          _
        // Predicated region
        $region33: #{egnn_forward_batched.1} parent=11 // pred_check
          %p388 = pneg %p227
        $region34: #{egnn_forward_batched.1} parent=11 // pred_check_branch
          %390 = sbr.rel (%p388) target = $region36
        $region35: #{egnn_forward_batched.1} parent=11 // pred_region
          _
        $region36: #{egnn_forward_batched.1} parent=11 // pred_fallthru
          _
        // Predicated region
        $region37: #{egnn_forward_batched.1} parent=11 // pred_check
          %p391 = pneg %p248
        $region38: #{egnn_forward_batched.1} parent=11 // pred_check_branch
          %393 = sbr.rel (%p391) target = $region40
        $region39: #{egnn_forward_batched.1} parent=11 // pred_region
          _
        $region40: #{egnn_forward_batched.1} parent=11 // pred_fallthru
          _
        // Predicated region
        $region41: #{egnn_forward_batched.1} parent=11 // pred_check
          %p394 = pneg %p269
        $region42: #{egnn_forward_batched.1} parent=11 // pred_check_branch
          %396 = sbr.rel (%p394) target = $region44
        $region43: #{egnn_forward_batched.1} parent=11 // pred_region
          _
        $region44: #{egnn_forward_batched.1} parent=11 // pred_fallthru
          _
        // Predicated region
        $region45: #{egnn_forward_batched.1} parent=11 // pred_check
          %p397 = pneg %p290
        $region46: #{egnn_forward_batched.1} parent=11 // pred_check_branch
          %399 = sbr.rel (%p397) target = $region48
        $region47: #{egnn_forward_batched.1} parent=11 // pred_region
          _
        $region48: #{egnn_forward_batched.1} parent=11 // pred_fallthru
          _
        // Predicated region
        $region49: #{egnn_forward_batched.1} parent=11 // pred_check
          %p400 = pneg %p311
        $region50: #{egnn_forward_batched.1} parent=11 // pred_check_branch
          %402 = sbr.rel (%p400) target = $region52
        $region51: #{egnn_forward_batched.1} parent=11 // pred_region
          _
        $region52: #{egnn_forward_batched.1} parent=11 // pred_fallthru
          _
        // Predicated region
        $region53: #{egnn_forward_batched.1} parent=11 // pred_check
          %p403 = pneg %p332
        $region54: #{egnn_forward_batched.1} parent=11 // pred_check_branch
          %405 = sbr.rel (%p403) target = $region56
        $region55: #{egnn_forward_batched.1} parent=11 // pred_region
          _
        $region56: #{egnn_forward_batched.1} parent=11 // pred_fallthru
          _
      $region12: #{egnn_forward_batched.1} parent=5 // pred_fallthru
        _
      %p406 = scmp.lt.s32.totalorder %s23, 2
      // Predicated region
      $region57: #{egnn_forward_batched.1} parent=5 // pred_check
        %p407 = pneg %p406
      $region58: #{egnn_forward_batched.1} parent=5 // pred_check_branch
        %409 = sbr.rel (%p407) target = $region60
      $region59: #{egnn_forward_batched.1} parent=5 // pred_region
        // Predicated region
        $region61: #{egnn_forward_batched.1} parent=59 // pred_check
          %p410 = pneg %p43
        $region62: #{egnn_forward_batched.1} parent=59 // pred_check_branch
          %412 = sbr.rel (%p410) target = $region64
        $region63: #{egnn_forward_batched.1} parent=59 // pred_region
          %p413 = scmp.lt.s32.totalorder %s23, 1
          %s414 = scalar_select %p413, %s23, 1
          %s415 = smul.addr %s414, 8
          %s416 = smul.addr %s415, 8
          %s417 = scalar_lea.vmem %s0, %s416
        $region64: #{egnn_forward_batched.1} parent=59 // pred_fallthru
          _
        // Predicated region
        $region65: #{egnn_forward_batched.1} parent=59 // pred_check
          %p418 = pneg %p69
        $region66: #{egnn_forward_batched.1} parent=59 // pred_check_branch
          %420 = sbr.rel (%p418) target = $region68
        $region67: #{egnn_forward_batched.1} parent=59 // pred_region
          %p421 = scmp.lt.s32.totalorder %s23, 1
          %s422 = scalar_select %p421, %s23, 1
          %s423 = smul.addr %s422, 8
          %s424 = scalar_lea.vmem %s1, %s423
        $region68: #{egnn_forward_batched.1} parent=59 // pred_fallthru
          _
        // Predicated region
        $region69: #{egnn_forward_batched.1} parent=59 // pred_check
          %p425 = pneg %p95
        $region70: #{egnn_forward_batched.1} parent=59 // pred_check_branch
          %427 = sbr.rel (%p425) target = $region72
        $region71: #{egnn_forward_batched.1} parent=59 // pred_region
          %p428 = scmp.lt.s32.totalorder %s23, 1
          %s429 = scalar_select %p428, %s23, 1
          %s430 = smul.addr %s429, 8
          %s431 = smul.addr %s430, 8
          %s432 = scalar_lea.vmem %s2, %s431
        $region72: #{egnn_forward_batched.1} parent=59 // pred_fallthru
          _
      $region60: #{egnn_forward_batched.1} parent=5 // pred_fallthru
        _
      %p433 = scmp.le.s32.totalorder 1, %s23
      %p434 = scmp.lt.s32.totalorder %s23, 3
      %p435 = pnand %p433, %p434
      %p436 = pneg %p435
      // Predicated region
      $region73: #{egnn_forward_batched.1} parent=5 // pred_check
        _
      $region74: #{egnn_forward_batched.1} parent=5 // pred_check_branch
        %438 = sbr.rel (%p435) target = $region76
      $region75: #{egnn_forward_batched.1} parent=5 // pred_region
        %s439 = ssub.s32 %s23, 1
        %p440 = scmp.lt.s32.totalorder %s28, 1
        %s441 = scalar_select %p440, %s28, 1
        %s442 = smul.addr %s441, 8
        %s443 = smul.addr %s442, 8
        %s444 = scalar_lea.vmem %s0, %s443
        %p445 = pneg %p49
        %p446 = pneg %p46
        %p447 = scmp.lt.s32.totalorder %s28, 1
        %s448 = scalar_select %p447, %s28, 1
        %s449 = smul.addr %s448, 8
        %s450 = scalar_lea.vmem %s1, %s449
        %p451 = pneg %p75
        %p452 = pneg %p72
        %p453 = scmp.lt.s32.totalorder %s28, 1
        %s454 = scalar_select %p453, %s28, 1
        %s455 = smul.addr %s454, 8
        %s456 = smul.addr %s455, 8
        %s457 = scalar_lea.vmem %s2, %s456
        %p458 = pneg %p101
        %p459 = pneg %p98
        %p460 = pneg %p122
        %p461 = pneg %p119
        %p462 = pneg %p143
        %p463 = pneg %p140
        %p464 = pneg %p164
        %p465 = pneg %p161
        %p466 = pneg %p185
        %p467 = pneg %p182
        %p468 = pneg %p206
        %p469 = pneg %p203
        %p470 = pneg %p227
        %p471 = pneg %p224
        %p472 = pneg %p248
        %p473 = pneg %p245
        %p474 = pneg %p269
        %p475 = pneg %p266
        %p476 = pneg %p290
        %p477 = pneg %p287
        %p478 = pneg %p311
        %p479 = pneg %p308
        %p480 = pneg %p332
        %p481 = pneg %p329
        %p482 = pneg %p358
        %p483 = pneg %p355
        %s484 = sand.u32 %s345, 1
        %s485 = scalar_lea.sflag [#allocation3], %s484
        %s486 = sand.u32 %s345, 1
        %s487 = smul.addr %s486, 8
        %s488 = scalar_lea.vmem [#allocation2], %s487
        %p489 = scmp.lt.s32.totalorder %s28, 1
        %s490 = scalar_select %p489, %s28, 1
        %s491 = smul.addr %s490, 8
        %s492 = smul.addr %s491, 8
        %s493 = scalar_lea.vmem %s0, %s492
        %p494 = scmp.lt.s32.totalorder %s28, 1
        %s495 = scalar_select %p494, %s28, 1
        %s496 = smul.addr %s495, 8
        %s497 = scalar_lea.vmem %s1, %s496
        %p498 = scmp.lt.s32.totalorder %s28, 1
        %s499 = scalar_select %p498, %s28, 1
        %s500 = smul.addr %s499, 8
        %s501 = smul.addr %s500, 8
        %s502 = scalar_lea.vmem %s2, %s501
        %v503 = vld [vmem:[%s493] sm:$0xff]
        %v504 = vld [vmem:[%s493 + $0x8] sm:$0xff]
        %v505 = vld [vmem:[%s493 + $0x10] sm:$0xff]
        %v506 = vld [vmem:[%s493 + $0x18] sm:$0xff]
        %v507 = vld [vmem:[%s493 + $0x20] sm:$0xff]
        %v508 = vld [vmem:[%s493 + $0x28] sm:$0xff]
        %v509 = vld [vmem:[%s493 + $0x30] sm:$0xff]
        %v510 = vld [vmem:[%s493 + $0x38] sm:$0xff]
        %v511 = vld [vmem:[%s497] sm:$0xff]
        %v512 = vld [vmem:[%s502] sm:$0xff]
        %v513 = vld [vmem:[%s502 + $0x8] sm:$0xff]
        %v514 = vld [vmem:[%s502 + $0x10] sm:$0xff]
        %v515 = vld [vmem:[%s502 + $0x18] sm:$0xff]
        %v516 = vld [vmem:[%s502 + $0x20] sm:$0xff]
        %v517 = vld [vmem:[%s502 + $0x28] sm:$0xff]
        %v518 = vld [vmem:[%s502 + $0x30] sm:$0xff]
        %v519 = vld [vmem:[%s502 + $0x38] sm:$0xff]
        %vm520 = vcmask 523264
        %v522 = vsel %vm520, %v503, 0
        %v525 = vsel %vm520, %v504, 0
        %v528 = vsel %vm520, %v505, 0
        %v531 = vsel %vm520, %v506, 0
        %v534 = vsel %vm520, %v507, 0
        %v537 = vsel %vm520, %v508, 0
        %v540 = vsel %vm520, %v509, 0
        %v543 = vsel %vm520, %v510, 0
        %545 = vmatpush.msra.mxu0 0.0
        %546 = vmatpush.msra.mxu0 0.0
        %547 = vmatpush.msra.mxu0 0.0
        %548 = vmatpush.msra.mxu0 0.0
        %549 = vmatpush.msra.mxu0 0.0
        %550 = vmatpush.msra.mxu0 0.0
        %551 = vmatpush.msra.mxu0 0.0
        %552 = vmatpush.msra.mxu0 0.0
        %553 = vmatpush.msra.mxu0 %v519
        %554 = vmatpush.msra.mxu0 %v518
        %555 = vmatpush.msra.mxu0 %v517
        %556 = vmatpush.msra.mxu0 %v516
        %557 = vmatpush.msra.mxu0 %v515
        %558 = vmatpush.msra.mxu0 %v514
        %559 = vmatpush.msra.mxu0 %v513
        %560 = vmatpush.msra.mxu0 %v512
        %561 = vmatmul.f32.gmra.mxu0 %v522
        %v562 = vpop.f32.mrf.mxu0
        %v563 = vadd.f32 0.0, %v562
        %564 = vmatmul.f32.gmra.mxu0 %v525
        %v565 = vpop.f32.mrf.mxu0
        %v566 = vadd.f32 0.0, %v565
        %567 = vmatmul.f32.gmra.mxu0 %v528
        %v568 = vpop.f32.mrf.mxu0
        %v569 = vadd.f32 0.0, %v568
        %570 = vmatmul.f32.gmra.mxu0 %v531
        %v571 = vpop.f32.mrf.mxu0
        %v572 = vadd.f32 0.0, %v571
        %573 = vmatmul.f32.gmra.mxu0 %v534
        %v574 = vpop.f32.mrf.mxu0
        %v575 = vadd.f32 0.0, %v574
        %576 = vmatmul.f32.gmra.mxu0 %v537
        %v577 = vpop.f32.mrf.mxu0
        %v578 = vadd.f32 0.0, %v577
        %579 = vmatmul.f32.gmra.mxu0 %v540
        %v580 = vpop.f32.mrf.mxu0
        %v581 = vadd.f32 0.0, %v580
        %582 = vmatmul.f32.gmra.mxu0 %v543
        %v583 = vpop.f32.mrf.mxu0
        %v584 = vadd.f32 0.0, %v583
        %585 = vdwg.mxu0
        %v586 = vld [vmem:[%s3] sm:$0xf]
        %v587 = vld [vmem:[%s4] sm:$0xf]
        %vm588 = vcmask 31744
        %v590 = vsel %vm588, %v512, 0
        %v593 = vsel %vm588, %v513, 0
        %v596 = vsel %vm588, %v514, 0
        %v599 = vsel %vm588, %v515, 0
        %v602 = vsel %vm588, %v516, 0
        %v605 = vsel %vm588, %v517, 0
        %v608 = vsel %vm588, %v518, 0
        %v611 = vsel %vm588, %v519, 0
        %vm613 = vcmask 1043456
        %v615 = vsel %vm613, %v587, 0
        %617 = vmatpush.msra.mxu0 0.0
        %618 = vmatpush.msra.mxu0 0.0
        %619 = vmatpush.msra.mxu0 0.0
        %620 = vmatpush.msra.mxu0 0.0
        %621 = vmatpush.msra.mxu0 0.0
        %622 = vmatpush.msra.mxu0 0.0
        %623 = vmatpush.msra.mxu0 0.0
        %624 = vmatpush.msra.mxu0 0.0
        %625 = vmatpush.msra.mxu0 0.0
        %626 = vmatpush.msra.mxu0 0.0
        %627 = vmatpush.msra.mxu0 0.0
        %628 = vmatpush.msra.mxu0 0.0
        %629 = vmatpush.msra.mxu0 0.0
        %630 = vmatpush.msra.mxu0 0.0
        %631 = vmatpush.msra.mxu0 0.0
        %632 = vmatpush.msra.mxu0 %v615
        %633 = vmatmul.f32.gmra.mxu0 %v590
        %v634 = vpop.f32.mrf.mxu0
        %v635 = vadd.f32 0.0, %v634
        %636 = vmatmul.f32.gmra.mxu0 %v593
        %v637 = vpop.f32.mrf.mxu0
        %v638 = vadd.f32 0.0, %v637
        %639 = vmatmul.f32.gmra.mxu0 %v596
        %v640 = vpop.f32.mrf.mxu0
        %v641 = vadd.f32 0.0, %v640
        %642 = vmatmul.f32.gmra.mxu0 %v599
        %v643 = vpop.f32.mrf.mxu0
        %v644 = vadd.f32 0.0, %v643
        %645 = vmatmul.f32.gmra.mxu0 %v602
        %v646 = vpop.f32.mrf.mxu0
        %v647 = vadd.f32 0.0, %v646
        %648 = vmatmul.f32.gmra.mxu0 %v605
        %v649 = vpop.f32.mrf.mxu0
        %v650 = vadd.f32 0.0, %v649
        %651 = vmatmul.f32.gmra.mxu0 %v608
        %v652 = vpop.f32.mrf.mxu0
        %v653 = vadd.f32 0.0, %v652
        %654 = vmatmul.f32.gmra.mxu0 %v611
        %v655 = vpop.f32.mrf.mxu0
        %v656 = vadd.f32 0.0, %v655
        %657 = vdwg.mxu0
        %v659 = vsel %vm588, %v563, 0
        %v662 = vsel %vm588, %v566, 0
        %v665 = vsel %vm588, %v569, 0
        %v668 = vsel %vm588, %v572, 0
        %v671 = vsel %vm588, %v575, 0
        %v674 = vsel %vm588, %v578, 0
        %v677 = vsel %vm588, %v581, 0
        %v680 = vsel %vm588, %v584, 0
        %v683 = vsel %vm613, %v586, 0
        %685 = vmatpush.msra.mxu0 0.0
        %686 = vmatpush.msra.mxu0 0.0
        %687 = vmatpush.msra.mxu0 0.0
        %688 = vmatpush.msra.mxu0 0.0
        %689 = vmatpush.msra.mxu0 0.0
        %690 = vmatpush.msra.mxu0 0.0
        %691 = vmatpush.msra.mxu0 0.0
        %692 = vmatpush.msra.mxu0 0.0
        %693 = vmatpush.msra.mxu0 0.0
        %694 = vmatpush.msra.mxu0 0.0
        %695 = vmatpush.msra.mxu0 0.0
        %696 = vmatpush.msra.mxu0 0.0
        %697 = vmatpush.msra.mxu0 0.0
        %698 = vmatpush.msra.mxu0 0.0
        %699 = vmatpush.msra.mxu0 0.0
        %700 = vmatpush.msra.mxu0 %v683
        %701 = vmatmul.f32.gmra.mxu0 %v659
        %v702 = vpop.f32.mrf.mxu0
        %v703 = vadd.f32 %v635, %v702
        %704 = vmatmul.f32.gmra.mxu0 %v662
        %v705 = vpop.f32.mrf.mxu0
        %v706 = vadd.f32 %v638, %v705
        %707 = vmatmul.f32.gmra.mxu0 %v665
        %v708 = vpop.f32.mrf.mxu0
        %v709 = vadd.f32 %v641, %v708
        %710 = vmatmul.f32.gmra.mxu0 %v668
        %v711 = vpop.f32.mrf.mxu0
        %v712 = vadd.f32 %v644, %v711
        %713 = vmatmul.f32.gmra.mxu0 %v671
        %v714 = vpop.f32.mrf.mxu0
        %v715 = vadd.f32 %v647, %v714
        %716 = vmatmul.f32.gmra.mxu0 %v674
        %v717 = vpop.f32.mrf.mxu0
        %v718 = vadd.f32 %v650, %v717
        %719 = vmatmul.f32.gmra.mxu0 %v677
        %v720 = vpop.f32.mrf.mxu0
        %v721 = vadd.f32 %v653, %v720
        %722 = vmatmul.f32.gmra.mxu0 %v680
        %v723 = vpop.f32.mrf.mxu0
        %v724 = vadd.f32 %v656, %v723
        %725 = vdwg.mxu0
        %v726 = vld [vmem:[%s5] sm:$0x1]
        %v728 = vperm.slane %v726, 0
        %v730 = vadd.f32 %v703, %v728
        %v731 = vadd.f32 %v706, %v728
        %v732 = vadd.f32 %v709, %v728
        %v733 = vadd.f32 %v712, %v728
        %v734 = vadd.f32 %v715, %v728
        %v735 = vadd.f32 %v718, %v728
        %v736 = vadd.f32 %v721, %v728
        %v737 = vadd.f32 %v724, %v728
        %v738 = vmax.f32 %v730, 0.0
        %v739 = vmax.f32 %v731, 0.0
        %v740 = vmax.f32 %v732, 0.0
        %v741 = vmax.f32 %v733, 0.0
        %v742 = vmax.f32 %v734, 0.0
        %v743 = vmax.f32 %v735, 0.0
        %v744 = vmax.f32 %v736, 0.0
        %v745 = vmax.f32 %v737, 0.0
        %746 = vmatpush.msra.mxu0 0.0
        %747 = vmatpush.msra.mxu0 0.0
        %748 = vmatpush.msra.mxu0 0.0
        %749 = vmatpush.msra.mxu0 0.0
        %750 = vmatpush.msra.mxu0 0.0
        %751 = vmatpush.msra.mxu0 0.0
        %752 = vmatpush.msra.mxu0 0.0
        %753 = vmatpush.msra.mxu0 0.0
        %754 = vmatpush.msra.mxu0 %v745
        %755 = vmatpush.msra.mxu0 %v744
        %756 = vmatpush.msra.mxu0 %v743
        %757 = vmatpush.msra.mxu0 %v742
        %758 = vmatpush.msra.mxu0 %v741
        %759 = vmatpush.msra.mxu0 %v740
        %760 = vmatpush.msra.mxu0 %v739
        %761 = vmatpush.msra.mxu0 %v738
        %762 = vmatmul.f32.gmra.mxu0 %v522
        %v763 = vpop.f32.mrf.mxu0
        %v764 = vadd.f32 0.0, %v763
        %765 = vmatmul.f32.gmra.mxu0 %v525
        %v766 = vpop.f32.mrf.mxu0
        %v767 = vadd.f32 0.0, %v766
        %768 = vmatmul.f32.gmra.mxu0 %v528
        %v769 = vpop.f32.mrf.mxu0
        %v770 = vadd.f32 0.0, %v769
        %771 = vmatmul.f32.gmra.mxu0 %v531
        %v772 = vpop.f32.mrf.mxu0
        %v773 = vadd.f32 0.0, %v772
        %774 = vmatmul.f32.gmra.mxu0 %v534
        %v775 = vpop.f32.mrf.mxu0
        %v776 = vadd.f32 0.0, %v775
        %777 = vmatmul.f32.gmra.mxu0 %v537
        %v778 = vpop.f32.mrf.mxu0
        %v779 = vadd.f32 0.0, %v778
        %780 = vmatmul.f32.gmra.mxu0 %v540
        %v781 = vpop.f32.mrf.mxu0
        %v782 = vadd.f32 0.0, %v781
        %783 = vmatmul.f32.gmra.mxu0 %v543
        %v784 = vpop.f32.mrf.mxu0
        %v785 = vadd.f32 0.0, %v784
        %786 = vdwg.mxu0
        %v787 = vld [vmem:[%s6] sm:$0xff]
        %v788 = vld [vmem:[%s6 + $0x8] sm:$0xff]
        %v789 = vld [vmem:[%s6 + $0x10] sm:$0xff]
        %v790 = vld [vmem:[%s6 + $0x18] sm:$0xff]
        %v791 = vld [vmem:[%s7] sm:$0xff]
        %v792 = vld [vmem:[%s7 + $0x8] sm:$0xff]
        %v793 = vld [vmem:[%s7 + $0x10] sm:$0xff]
        %v794 = vld [vmem:[%s7 + $0x18] sm:$0xff]
        %vm795 = vcmask 261120
        %v797 = vsel %vm795, %v738, 0
        %v800 = vsel %vm795, %v739, 0
        %v803 = vsel %vm795, %v740, 0
        %v806 = vsel %vm795, %v741, 0
        %v809 = vsel %vm795, %v742, 0
        %v812 = vsel %vm795, %v743, 0
        %v815 = vsel %vm795, %v744, 0
        %v818 = vsel %vm795, %v745, 0
        %820 = vmatpush.msra.mxu0 0.0
        %821 = vmatpush.msra.mxu0 0.0
        %822 = vmatpush.msra.mxu0 0.0
        %823 = vmatpush.msra.mxu0 0.0
        %824 = vmatpush.msra.mxu0 0.0
        %825 = vmatpush.msra.mxu0 0.0
        %826 = vmatpush.msra.mxu0 0.0
        %827 = vmatpush.msra.mxu0 0.0
        %828 = vmatpush.msra.mxu0 0.0
        %829 = vmatpush.msra.mxu0 0.0
        %830 = vmatpush.msra.mxu0 0.0
        %831 = vmatpush.msra.mxu0 0.0
        %832 = vmatpush.msra.mxu0 %v794
        %833 = vmatpush.msra.mxu0 %v793
        %834 = vmatpush.msra.mxu0 %v792
        %835 = vmatpush.msra.mxu0 %v791
        %836 = vmatmul.f32.gmra.mxu0 %v797
        %v837 = vpop.f32.mrf.mxu0
        %v838 = vadd.f32 0.0, %v837
        %839 = vmatmul.f32.gmra.mxu0 %v800
        %v840 = vpop.f32.mrf.mxu0
        %v841 = vadd.f32 0.0, %v840
        %842 = vmatmul.f32.gmra.mxu0 %v803
        %v843 = vpop.f32.mrf.mxu0
        %v844 = vadd.f32 0.0, %v843
        %845 = vmatmul.f32.gmra.mxu0 %v806
        %v846 = vpop.f32.mrf.mxu0
        %v847 = vadd.f32 0.0, %v846
        %848 = vmatmul.f32.gmra.mxu0 %v809
        %v849 = vpop.f32.mrf.mxu0
        %v850 = vadd.f32 0.0, %v849
        %851 = vmatmul.f32.gmra.mxu0 %v812
        %v852 = vpop.f32.mrf.mxu0
        %v853 = vadd.f32 0.0, %v852
        %854 = vmatmul.f32.gmra.mxu0 %v815
        %v855 = vpop.f32.mrf.mxu0
        %v856 = vadd.f32 0.0, %v855
        %857 = vmatmul.f32.gmra.mxu0 %v818
        %v858 = vpop.f32.mrf.mxu0
        %v859 = vadd.f32 0.0, %v858
        %860 = vdwg.mxu0
        %v862 = vsel %vm795, %v764, 0
        %v865 = vsel %vm795, %v767, 0
        %v868 = vsel %vm795, %v770, 0
        %v871 = vsel %vm795, %v773, 0
        %v874 = vsel %vm795, %v776, 0
        %v877 = vsel %vm795, %v779, 0
        %v880 = vsel %vm795, %v782, 0
        %v883 = vsel %vm795, %v785, 0
        %885 = vmatpush.msra.mxu0 0.0
        %886 = vmatpush.msra.mxu0 0.0
        %887 = vmatpush.msra.mxu0 0.0
        %888 = vmatpush.msra.mxu0 0.0
        %889 = vmatpush.msra.mxu0 0.0
        %890 = vmatpush.msra.mxu0 0.0
        %891 = vmatpush.msra.mxu0 0.0
        %892 = vmatpush.msra.mxu0 0.0
        %893 = vmatpush.msra.mxu0 0.0
        %894 = vmatpush.msra.mxu0 0.0
        %895 = vmatpush.msra.mxu0 0.0
        %896 = vmatpush.msra.mxu0 0.0
        %897 = vmatpush.msra.mxu0 %v790
        %898 = vmatpush.msra.mxu0 %v789
        %899 = vmatpush.msra.mxu0 %v788
        %900 = vmatpush.msra.mxu0 %v787
        %901 = vmatmul.f32.gmra.mxu0 %v862
        %v902 = vpop.f32.mrf.mxu0
        %v903 = vadd.f32 %v838, %v902
        %904 = vmatmul.f32.gmra.mxu0 %v865
        %v905 = vpop.f32.mrf.mxu0
        %v906 = vadd.f32 %v841, %v905
        %907 = vmatmul.f32.gmra.mxu0 %v868
        %v908 = vpop.f32.mrf.mxu0
        %v909 = vadd.f32 %v844, %v908
        %910 = vmatmul.f32.gmra.mxu0 %v871
        %v911 = vpop.f32.mrf.mxu0
        %v912 = vadd.f32 %v847, %v911
        %913 = vmatmul.f32.gmra.mxu0 %v874
        %v914 = vpop.f32.mrf.mxu0
        %v915 = vadd.f32 %v850, %v914
        %916 = vmatmul.f32.gmra.mxu0 %v877
        %v917 = vpop.f32.mrf.mxu0
        %v918 = vadd.f32 %v853, %v917
        %919 = vmatmul.f32.gmra.mxu0 %v880
        %v920 = vpop.f32.mrf.mxu0
        %v921 = vadd.f32 %v856, %v920
        %922 = vmatmul.f32.gmra.mxu0 %v883
        %v923 = vpop.f32.mrf.mxu0
        %v924 = vadd.f32 %v859, %v923
        %925 = vdwg.mxu0
        %v926 = vld [vmem:[%s8] sm:$0x1]
        %v928 = vperm.slane %v926, 0
        %v930 = vadd.f32 %v903, %v928
        %v931 = vadd.f32 %v906, %v928
        %v932 = vadd.f32 %v909, %v928
        %v933 = vadd.f32 %v912, %v928
        %v934 = vadd.f32 %v915, %v928
        %v935 = vadd.f32 %v918, %v928
        %v936 = vadd.f32 %v921, %v928
        %v937 = vadd.f32 %v924, %v928
        %v938 = vmax.f32 %v930, 0.0
        %v939 = vmax.f32 %v931, 0.0
        %v940 = vmax.f32 %v932, 0.0
        %v941 = vmax.f32 %v933, 0.0
        %v942 = vmax.f32 %v934, 0.0
        %v943 = vmax.f32 %v935, 0.0
        %v944 = vmax.f32 %v936, 0.0
        %v945 = vmax.f32 %v937, 0.0
        %946 = vmatpush.msra.mxu0 0.0
        %947 = vmatpush.msra.mxu0 0.0
        %948 = vmatpush.msra.mxu0 0.0
        %949 = vmatpush.msra.mxu0 0.0
        %950 = vmatpush.msra.mxu0 0.0
        %951 = vmatpush.msra.mxu0 0.0
        %952 = vmatpush.msra.mxu0 0.0
        %953 = vmatpush.msra.mxu0 0.0
        %954 = vmatpush.msra.mxu0 %v945
        %955 = vmatpush.msra.mxu0 %v944
        %956 = vmatpush.msra.mxu0 %v943
        %957 = vmatpush.msra.mxu0 %v942
        %958 = vmatpush.msra.mxu0 %v941
        %959 = vmatpush.msra.mxu0 %v940
        %960 = vmatpush.msra.mxu0 %v939
        %961 = vmatpush.msra.mxu0 %v938
        %962 = vmatmul.f32.gmra.mxu0 %v522
        %v963 = vpop.f32.mrf.mxu0
        %v964 = vadd.f32 0.0, %v963
        %965 = vmatmul.f32.gmra.mxu0 %v525
        %v966 = vpop.f32.mrf.mxu0
        %v967 = vadd.f32 0.0, %v966
        %968 = vmatmul.f32.gmra.mxu0 %v528
        %v969 = vpop.f32.mrf.mxu0
        %v970 = vadd.f32 0.0, %v969
        %971 = vmatmul.f32.gmra.mxu0 %v531
        %v972 = vpop.f32.mrf.mxu0
        %v973 = vadd.f32 0.0, %v972
        %974 = vmatmul.f32.gmra.mxu0 %v534
        %v975 = vpop.f32.mrf.mxu0
        %v976 = vadd.f32 0.0, %v975
        %977 = vmatmul.f32.gmra.mxu0 %v537
        %v978 = vpop.f32.mrf.mxu0
        %v979 = vadd.f32 0.0, %v978
        %980 = vmatmul.f32.gmra.mxu0 %v540
        %v981 = vpop.f32.mrf.mxu0
        %v982 = vadd.f32 0.0, %v981
        %983 = vmatmul.f32.gmra.mxu0 %v543
        %v984 = vpop.f32.mrf.mxu0
        %v985 = vadd.f32 0.0, %v984
        %986 = vdwg.mxu0
        %v987 = vld [vmem:[%s9] sm:$0xff]
        %v988 = vld [vmem:[%s9 + $0x8] sm:$0xff]
        %v989 = vld [vmem:[%s9 + $0x10] sm:$0xff]
        %v990 = vld [vmem:[%s9 + $0x18] sm:$0xff]
        %v991 = vld [vmem:[%s10] sm:$0xff]
        %v992 = vld [vmem:[%s10 + $0x8] sm:$0xff]
        %v993 = vld [vmem:[%s10 + $0x10] sm:$0xff]
        %v994 = vld [vmem:[%s10 + $0x18] sm:$0xff]
        %v996 = vsel %vm795, %v938, 0
        %v999 = vsel %vm795, %v939, 0
        %v1002 = vsel %vm795, %v940, 0
        %v1005 = vsel %vm795, %v941, 0
        %v1008 = vsel %vm795, %v942, 0
        %v1011 = vsel %vm795, %v943, 0
        %v1014 = vsel %vm795, %v944, 0
        %v1017 = vsel %vm795, %v945, 0
        %1019 = vmatpush.msra.mxu0 0.0
        %1020 = vmatpush.msra.mxu0 0.0
        %1021 = vmatpush.msra.mxu0 0.0
        %1022 = vmatpush.msra.mxu0 0.0
        %1023 = vmatpush.msra.mxu0 0.0
        %1024 = vmatpush.msra.mxu0 0.0
        %1025 = vmatpush.msra.mxu0 0.0
        %1026 = vmatpush.msra.mxu0 0.0
        %1027 = vmatpush.msra.mxu0 0.0
        %1028 = vmatpush.msra.mxu0 0.0
        %1029 = vmatpush.msra.mxu0 0.0
        %1030 = vmatpush.msra.mxu0 0.0
        %1031 = vmatpush.msra.mxu0 %v994
        %1032 = vmatpush.msra.mxu0 %v993
        %1033 = vmatpush.msra.mxu0 %v992
        %1034 = vmatpush.msra.mxu0 %v991
        %1035 = vmatmul.f32.gmra.mxu0 %v996
        %v1036 = vpop.f32.mrf.mxu0
        %v1037 = vadd.f32 0.0, %v1036
        %1038 = vmatmul.f32.gmra.mxu0 %v999
        %v1039 = vpop.f32.mrf.mxu0
        %v1040 = vadd.f32 0.0, %v1039
        %1041 = vmatmul.f32.gmra.mxu0 %v1002
        %v1042 = vpop.f32.mrf.mxu0
        %v1043 = vadd.f32 0.0, %v1042
        %1044 = vmatmul.f32.gmra.mxu0 %v1005
        %v1045 = vpop.f32.mrf.mxu0
        %v1046 = vadd.f32 0.0, %v1045
        %1047 = vmatmul.f32.gmra.mxu0 %v1008
        %v1048 = vpop.f32.mrf.mxu0
        %v1049 = vadd.f32 0.0, %v1048
        %1050 = vmatmul.f32.gmra.mxu0 %v1011
        %v1051 = vpop.f32.mrf.mxu0
        %v1052 = vadd.f32 0.0, %v1051
        %1053 = vmatmul.f32.gmra.mxu0 %v1014
        %v1054 = vpop.f32.mrf.mxu0
        %v1055 = vadd.f32 0.0, %v1054
        %1056 = vmatmul.f32.gmra.mxu0 %v1017
        %v1057 = vpop.f32.mrf.mxu0
        %v1058 = vadd.f32 0.0, %v1057
        %1059 = vdwg.mxu0
        %v1061 = vsel %vm795, %v964, 0
        %v1064 = vsel %vm795, %v967, 0
        %v1067 = vsel %vm795, %v970, 0
        %v1070 = vsel %vm795, %v973, 0
        %v1073 = vsel %vm795, %v976, 0
        %v1076 = vsel %vm795, %v979, 0
        %v1079 = vsel %vm795, %v982, 0
        %v1082 = vsel %vm795, %v985, 0
        %1084 = vmatpush.msra.mxu0 0.0
        %1085 = vmatpush.msra.mxu0 0.0
        %1086 = vmatpush.msra.mxu0 0.0
        %1087 = vmatpush.msra.mxu0 0.0
        %1088 = vmatpush.msra.mxu0 0.0
        %1089 = vmatpush.msra.mxu0 0.0
        %1090 = vmatpush.msra.mxu0 0.0
        %1091 = vmatpush.msra.mxu0 0.0
        %1092 = vmatpush.msra.mxu0 0.0
        %1093 = vmatpush.msra.mxu0 0.0
        %1094 = vmatpush.msra.mxu0 0.0
        %1095 = vmatpush.msra.mxu0 0.0
        %1096 = vmatpush.msra.mxu0 %v990
        %1097 = vmatpush.msra.mxu0 %v989
        %1098 = vmatpush.msra.mxu0 %v988
        %1099 = vmatpush.msra.mxu0 %v987
        %1100 = vmatmul.f32.gmra.mxu0 %v1061
        %v1101 = vpop.f32.mrf.mxu0
        %v1102 = vadd.f32 %v1037, %v1101
        %1103 = vmatmul.f32.gmra.mxu0 %v1064
        %v1104 = vpop.f32.mrf.mxu0
        %v1105 = vadd.f32 %v1040, %v1104
        %1106 = vmatmul.f32.gmra.mxu0 %v1067
        %v1107 = vpop.f32.mrf.mxu0
        %v1108 = vadd.f32 %v1043, %v1107
        %1109 = vmatmul.f32.gmra.mxu0 %v1070
        %v1110 = vpop.f32.mrf.mxu0
        %v1111 = vadd.f32 %v1046, %v1110
        %1112 = vmatmul.f32.gmra.mxu0 %v1073
        %v1113 = vpop.f32.mrf.mxu0
        %v1114 = vadd.f32 %v1049, %v1113
        %1115 = vmatmul.f32.gmra.mxu0 %v1076
        %v1116 = vpop.f32.mrf.mxu0
        %v1117 = vadd.f32 %v1052, %v1116
        %1118 = vmatmul.f32.gmra.mxu0 %v1079
        %v1119 = vpop.f32.mrf.mxu0
        %v1120 = vadd.f32 %v1055, %v1119
        %1121 = vmatmul.f32.gmra.mxu0 %v1082
        %v1122 = vpop.f32.mrf.mxu0
        %v1123 = vadd.f32 %v1058, %v1122
        %1124 = vdwg.mxu0
        %v1125 = vld [vmem:[%s11] sm:$0x1]
        %v1127 = vperm.slane %v1125, 0
        %v1129 = vadd.f32 %v1102, %v1127
        %v1130 = vadd.f32 %v1105, %v1127
        %v1131 = vadd.f32 %v1108, %v1127
        %v1132 = vadd.f32 %v1111, %v1127
        %v1133 = vadd.f32 %v1114, %v1127
        %v1134 = vadd.f32 %v1117, %v1127
        %v1135 = vadd.f32 %v1120, %v1127
        %v1136 = vadd.f32 %v1123, %v1127
        %v1138 = vsel %vm520, %v511, 0
        %1140 = vmatpush.msra.mxu0 0.0
        %1141 = vmatpush.msra.mxu0 0.0
        %1142 = vmatpush.msra.mxu0 0.0
        %1143 = vmatpush.msra.mxu0 0.0
        %1144 = vmatpush.msra.mxu0 0.0
        %1145 = vmatpush.msra.mxu0 0.0
        %1146 = vmatpush.msra.mxu0 0.0
        %1147 = vmatpush.msra.mxu0 0.0
        %1148 = vmatpush.msra.mxu0 %v1136
        %1149 = vmatpush.msra.mxu0 %v1135
        %1150 = vmatpush.msra.mxu0 %v1134
        %1151 = vmatpush.msra.mxu0 %v1133
        %1152 = vmatpush.msra.mxu0 %v1132
        %1153 = vmatpush.msra.mxu0 %v1131
        %1154 = vmatpush.msra.mxu0 %v1130
        %1155 = vmatpush.msra.mxu0 %v1129
        %1156 = vmatmul.f32.gmra.mxu0 %v1138
        %v1157 = vpop.f32.mrf.mxu0
        %v1158 = vadd.f32 0.0, %v1157
        %1159 = vdwg.mxu0
        %v1160 = vld [vmem:[%s12] sm:$0xff]
        %v1161 = vld [vmem:[%s12 + $0x8] sm:$0xff]
        %v1162 = vld [vmem:[%s12 + $0x10] sm:$0xff]
        %v1163 = vld [vmem:[%s12 + $0x18] sm:$0xff]
        %v1164 = vld [vmem:[%s13] sm:$0x1]
        %v1166 = vperm.slane %v1164, 0
        %v1169 = vsel %vm795, %v1158, 0
        %1171 = vmatpush.msra.mxu0 0.0
        %1172 = vmatpush.msra.mxu0 0.0
        %1173 = vmatpush.msra.mxu0 0.0
        %1174 = vmatpush.msra.mxu0 0.0
        %1175 = vmatpush.msra.mxu0 0.0
        %1176 = vmatpush.msra.mxu0 0.0
        %1177 = vmatpush.msra.mxu0 0.0
        %1178 = vmatpush.msra.mxu0 0.0
        %1179 = vmatpush.msra.mxu0 0.0
        %1180 = vmatpush.msra.mxu0 0.0
        %1181 = vmatpush.msra.mxu0 0.0
        %1182 = vmatpush.msra.mxu0 0.0
        %1183 = vmatpush.msra.mxu0 %v1163
        %1184 = vmatpush.msra.mxu0 %v1162
        %1185 = vmatpush.msra.mxu0 %v1161
        %1186 = vmatpush.msra.mxu0 %v1160
        %1187 = vmatmul.f32.gmra.mxu0 %v1169
        %v1188 = vpop.f32.mrf.mxu0
        %v1189 = vadd.f32 %v1166, %v1188
        %1190 = vdwg.mxu0
        %1191 = vst [vmem:[%s488] sm:$0xff] %v1189
        %s1192 = sand.u32 %s345, 1
        %s1193 = scalar_lea.sflag [#allocation3], %s1192
        %s1194 = sand.u32 %s345, 1
        %s1195 = smul.addr %s1194, 8
        %s1196 = scalar_lea.vmem [#allocation2], %s1195
        // Predicated region
        $region77: #{egnn_forward_batched.1} parent=75 // pred_check
          %p1197 = pneg %p355
        $region78: #{egnn_forward_batched.1} parent=75 // pred_check_branch
          %1199 = sbr.rel (%p1197) target = $region80
        $region79: #{egnn_forward_batched.1} parent=75 // pred_region
          %1201 = vsyncadd %s1193, 0
          %s1202 = smul.addr %s28, 8
          %s1203 = scalar_lea.hbm %s14, %s1202
          %s1205 = sshll.u32 %s1196, 4
          %s1206 = int_to_ptr.vmem [resolvable:$true] %s1205
          %s1207 = sshll.u32 %s1203, 4
          %s1208 = int_to_ptr.hbm [resolvable:$true] %s1207
          %1210 = dma.vmem_to_hbm [thread:$0]  %s1206, 128, %s1208, %s1193
        $region80: #{egnn_forward_batched.1} parent=75 // pred_fallthru
          _
      $region76: #{egnn_forward_batched.1} parent=5 // pred_fallthru
        _
      %p1211 = scmp.le.s32.totalorder 2, %s23
      // Predicated region
      $region81: #{egnn_forward_batched.1} parent=5 // pred_check
        %p1212 = pneg %p1211
      $region82: #{egnn_forward_batched.1} parent=5 // pred_check_branch
        %1214 = sbr.rel (%p1212) target = $region84
      $region83: #{egnn_forward_batched.1} parent=5 // pred_region
        %s1215 = ssub.s32 %s23, 2
        // Predicated region
        $region85: #{egnn_forward_batched.1} parent=83 // pred_check
          %p1216 = pneg %p361
        $region86: #{egnn_forward_batched.1} parent=83 // pred_check_branch
          %1218 = sbr.rel (%p1216) target = $region88
        $region87: #{egnn_forward_batched.1} parent=83 // pred_region
          %s1219 = sand.u32 %s346, 1
          %s1220 = scalar_lea.sflag [#allocation3], %s1219
          %s1221 = sand.u32 %s346, 1
          %s1222 = smul.addr %s1221, 8
          %s1223 = scalar_lea.vmem [#allocation2], %s1222
          %1225 = dma.done %s1220, 128
        $region88: #{egnn_forward_batched.1} parent=83 // pred_fallthru
          _
      $region84: #{egnn_forward_batched.1} parent=5 // pred_fallthru
        _
    $region6: #{egnn_forward_batched.1} parent=1 // loop_footer
      %s27 = sadd.s32 1, %s23
    $region7: #{egnn_forward_batched.1} parent=1 // loop_footer_branch
      %22 = sbr.rel target = $region3
    $region8: #{egnn_forward_batched.1} parent=1 // loop_exit
      _
    %1226 = vsyncpa [#allocation3], 1
    %s1227 = scalar_lea.sflag [#allocation3], 1
    %1228 = vsyncpa %s1227, 1

</llo_original>
